<compile_context>
chip_gen: v5e
topology: v5e:2x2
jax: 0.10.0
libtpu: 0.0.40
codegen_flags: <defaults>
</compile_context>

<pallas_src>
import functools
import math

import jax
import jax.numpy as jnp
from jax.experimental import pallas as pl
from jax.experimental.pallas import tpu as pltpu

LANE = 128


def _round_up(x, m):
    return (x + m - 1) // m * m


def _sage_layer_kernel(a_ref, x_ref, invdeg_ref, w_ref, b_ref, o_ref,
                       acc_ref, out_acc_ref, *, apply_relu, f_in_pad, tile_n, tile_k):
    """One SAGEConv layer, tiled over (dst tiles, src tiles).

    a_ref:      [tile_n, tile_k] int8   un-normalized {0,1} adjacency tile (dst-major).
    x_ref:      [N_pad, F_in_pad] bf16  whole feature matrix, resident in VMEM.
    invdeg_ref: [tile_n, 1] f32         exact 1/max(in_degree, 1) for this dst tile.
    w_ref:      [2*F_in_pad, F_out_pad] bf16   rows [:F_in_pad]=W_l (aggr), rest=W_r (self).
    b_ref:      [1, F_out_pad] f32.
    """
    i = pl.program_id(0)
    k = pl.program_id(1)

    @pl.when(k == 0)
    def _():
        acc_ref[...] = jnp.zeros_like(acc_ref)
        # Self/root projection done up-front: spreads MXU work away from the last k step
        # and overlaps it with the first adjacency-tile DMA.
        dst0 = pl.multiple_of(i * tile_n, tile_n)
        xd = x_ref[pl.ds(dst0, tile_n), :]
        out_acc_ref[...] = (
            jnp.dot(xd, w_ref[f_in_pad:, :], preferred_element_type=jnp.float32)
            + b_ref[...])

    # Aggregation partial sum for this src tile: [tile_n, F_in_pad], f32 accumulation.
    src0 = pl.multiple_of(k * tile_k, tile_k)
    xs = x_ref[pl.ds(src0, tile_k), :]
    acc_ref[...] += jnp.dot(a_ref[...].astype(jnp.bfloat16), xs,
                            preferred_element_type=jnp.float32)

    @pl.when(k == pl.num_programs(1) - 1)
    def _():
        # Exact f32 mean (sum * 1/deg) only now, then one K=F_in_pad projection matmul.
        aggr = (acc_ref[...] * invdeg_ref[...]).astype(jnp.bfloat16)
        out = out_acc_ref[...] + jnp.dot(aggr, w_ref[:f_in_pad, :],
                                         preferred_element_type=jnp.float32)
        if apply_relu:
            out = jnp.maximum(out, 0.0)
        o_ref[...] = out.astype(o_ref.dtype)


def sage_conv(a_mask, x, inv_deg, w_stacked, b, *, apply_relu, out_dtype, tile_n, tile_k):
    """One SAGEConv layer via a tiled pallas_call.

    a_mask:    [N_pad, N_pad]  int8  transposed {0,1} adjacency (a_mask[t, s] = edge s->t).
    x:         [N_pad, F_in_pad] bf16 (held resident in VMEM for the whole layer).
    inv_deg:   [N_pad, 1] f32   exact 1/max(in_degree, 1) per dst node.
    w_stacked: [2*F_in_pad, F_out_pad] bf16  ([W_l ; W_r], zero-padded).
    b:         [1, F_out_pad] f32.
    """
    n_pad = a_mask.shape[0]
    f_in_pad = x.shape[1]
    f_out_pad = w_stacked.shape[1]
    assert n_pad % tile_n == 0 and n_pad % tile_k == 0
    assert w_stacked.shape[0] == 2 * f_in_pad
    # Resident-x path: keep the whole feature matrix (and its pipeline buffer) well under
    # the 48 MiB VMEM limit used below.
    assert n_pad * f_in_pad * 2 <= 12 * 1024 * 1024, "x too large for the resident-x path"

    kernel = functools.partial(_sage_layer_kernel, apply_relu=apply_relu,
                               f_in_pad=f_in_pad, tile_n=tile_n, tile_k=tile_k)
    grid = (n_pad // tile_n, n_pad // tile_k)

    return pl.pallas_call(
        kernel,
        out_shape=jax.ShapeDtypeStruct((n_pad, f_out_pad), out_dtype),
        grid_spec=pltpu.PrefetchScalarGridSpec(
            num_scalar_prefetch=0,
            grid=grid,
            in_specs=[
                # Adjacency mask tile [tile_n (dst), tile_k (src)], int8.
                pl.BlockSpec((tile_n, tile_k), lambda i, k: (i, k)),
                # Whole x, resident in VMEM (constant index_map -> fetched once per layer).
                pl.BlockSpec((n_pad, f_in_pad), lambda i, k: (0, 0)),
                # Exact f32 inverse in-degree rows for this dst tile.
                pl.BlockSpec((tile_n, 1), lambda i, k: (i, 0)),
                # Stacked projection weight (whole thing, resident).
                pl.BlockSpec((2 * f_in_pad, f_out_pad), lambda i, k: (0, 0)),
                # Bias.
                pl.BlockSpec((1, f_out_pad), lambda i, k: (0, 0)),
            ],
            out_specs=pl.BlockSpec((tile_n, f_out_pad), lambda i, k: (i, 0)),
            scratch_shapes=[
                pltpu.VMEM((tile_n, f_in_pad), jnp.float32),    # aggregation accumulator
                pltpu.VMEM((tile_n, f_out_pad), jnp.float32),   # output accumulator
            ],
        ),
        compiler_params=pltpu.CompilerParams(
            dimension_semantics=("parallel", "arbitrary"),
            vmem_limit_bytes=48 * 1024 * 1024,   # safe on v7x (64 MiB); tiny vs v5e/v6e.
        ),
    )(a_mask, x, inv_deg, w_stacked, b)


def init_graphsage_params(key, in_features, hidden_features, out_features, n_layers):
    """Deterministic parameter init matching the SAGEConv stack shapes.
    Weights stored [F_in, F_out] so y = x @ W (== torch Linear with W^T)."""
    dims = [in_features] + [hidden_features] * (n_layers - 1) + [out_features]
    params = []
    for i in range(n_layers):
        fi, fo = dims[i], dims[i + 1]
        key, k1, k2, k3 = jax.random.split(key, 4)
        scale = 1.0 / jnp.sqrt(jnp.float32(fi))
        w_l = jax.random.normal(k1, (fi, fo), jnp.float32) * scale   # lin_l weight (on aggr)
        w_r = jax.random.normal(k2, (fi, fo), jnp.float32) * scale   # lin_r weight (on self)
        b = jax.random.normal(k3, (1, fo), jnp.float32) * 0.01       # lin_l bias
        params.append((w_l, w_r, b))
    return params


def graphsage_forward(x, adj, params, *, tile_n=256, tile_k=512):
    """Full GraphSAGE forward (eval mode: both dropouts are identity).

    x:   [N, F_in] f32,  adj: [N, N] f32 with adj[s, t] != 0 meaning edge s -> t.
    """
    n, f_in = x.shape

    # Clamp tiles for tiny graphs (keep 128 alignment) and pad N so both tiles divide it.
    n_128 = _round_up(n, LANE)
    tn = min(tile_n, n_128)
    tk = min(tile_k, n_128)
    n_pad = _round_up(n, math.lcm(tn, tk))

    # --- loop-invariant preprocessing (done once, outside all kernels) -------------------
    # Transposed un-normalized {0,1} adjacency (int8 halves the dominant N^2 HBM stream),
    # plus an exact f32 inverse in-degree per dst node applied at kernel finalize.
    edge = (adj != 0)
    mask_t = edge.astype(jnp.int8).T                                  # [dst, src]
    deg = jnp.sum(edge.astype(jnp.float32), axis=0)                   # in-degree per dst
    inv_deg = 1.0 / jnp.maximum(deg, 1.0)

    a_mask = jnp.zeros((n_pad, n_pad), jnp.int8).at[:n, :n].set(mask_t)
    inv_deg_p = jnp.ones((n_pad, 1), jnp.float32).at[:n, 0].set(inv_deg)

    f_in_pad = _round_up(f_in, LANE)
    h = jnp.zeros((n_pad, f_in_pad), jnp.bfloat16).at[:n, :f_in].set(x.astype(jnp.bfloat16))

    n_layers = len(params)
    for li, (w_l, w_r, b) in enumerate(params):
        fi, fo = w_l.shape
        fi_pad = h.shape[1]
        fo_pad = _round_up(fo, LANE)
        assert fi <= fi_pad

        # Stacked, zero-padded projection weight: rows [0:fi] act on aggr, rows
        # [fi_pad:fi_pad+fi] act on the self features (padding rows/cols are exact zeros).
        w_stacked = jnp.zeros((2 * fi_pad, fo_pad), jnp.float32)
        w_stacked = w_stacked.at[:fi, :fo].set(w_l)
        w_stacked = w_stacked.at[fi_pad:fi_pad + fi, :fo].set(w_r)
        w_stacked = w_stacked.astype(jnp.bfloat16)
        b_pad = jnp.zeros((1, fo_pad), jnp.float32).at[:, :fo].set(b.reshape(1, fo))

        is_last = li == n_layers - 1
        h = sage_conv(
            a_mask, h, inv_deg_p, w_stacked, b_pad,
            apply_relu=not is_last,
            out_dtype=jnp.float32 if is_last else jnp.bfloat16,   # hidden acts stay bf16
            tile_n=tn, tile_k=tk,
        )

    f_out = params[-1][0].shape[1]
    return h[:n, :f_out]


def _graphsage_reference(x, adj, params):
    """Pure-JAX f32 reference with identical eval semantics (for a loose sanity check)."""
    mask = (adj != 0).astype(jnp.float32)
    deg = jnp.maximum(jnp.sum(mask, axis=0), 1.0)
    a_norm = mask.T / deg[:, None]
    h = x
    n_layers = len(params)
    for li, (w_l, w_r, b) in enumerate(params):
        aggr = a_norm @ h
        out = aggr @ w_l + h @ w_r + b
        h = out if li == n_layers - 1 else jnp.maximum(out, 0.0)
    return h


if __name__ == "__main__":
    # Small synthetic problem: 16 nodes, in=8, hidden=32, out=8, 3 SAGEConv layers.
    N, IN_F, HID_F, OUT_F, N_LAYERS = 16, 8, 32, 8, 3

    key = jax.random.PRNGKey(0)
    key, kx, ka, kp = jax.random.split(key, 4)

    x = jax.random.normal(kx, (N, IN_F), jnp.float32)
    # Dense adjacency with ~30% edge density (values in {0,1}); adj[s, t] = edge s->t.
    adj = (jax.random.uniform(ka, (N, N)) < 0.3).astype(jnp.float32)

    params = init_graphsage_params(kp, IN_F, HID_F, OUT_F, N_LAYERS)

    out = graphsage_forward(x, adj, params)
    jax.block_until_ready(out)

    assert out.shape == (N, OUT_F), out.shape
    assert bool(jnp.all(jnp.isfinite(out)))

    # Loose tolerance: kernel runs activations / weights in bf16 (mean is exact f32).
    ref = _graphsage_reference(x, adj, params)
    max_err = float(jnp.max(jnp.abs(out - ref)))
    assert max_err < 0.1, f"max abs error vs f32 reference too large: {max_err}"

    print("KERNEL_OK")
</pallas_src>

<mosaic_0001>
module attributes {stable_mosaic.version = 11 : i64} {
  func.func @_sage_layer_kernel(%arg0: i32, %arg1: i32, %arg2: memref<128x128xi8, #tpu.memory_space<vmem>>, %arg3: memref<128x128xbf16, #tpu.memory_space<vmem>>, %arg4: memref<128x1xf32, #tpu.memory_space<vmem>>, %arg5: memref<256x128xbf16, #tpu.memory_space<vmem>>, %arg6: memref<1x128xf32, #tpu.memory_space<vmem>>, %arg7: memref<128x128xbf16, #tpu.memory_space<vmem>>, %arg8: memref<128x128xf32, #tpu.memory_space<vmem>>, %arg9: memref<128x128xf32, #tpu.memory_space<vmem>>) attributes {dimension_semantics = [#tpu.dimension_semantics<parallel>, #tpu.dimension_semantics<arbitrary>], iteration_bounds = array<i64: 1, 1>, scalar_prefetch = 0 : i64, scratch_operands = 2 : i64, tpu.core_type = #tpu.core_type<tc>, window_params = [{transform_indices = @transform_0, window_bounds = array<i64: 128, 128>}, {pipeline_mode = #tpu.pipeline_mode<synchronous>, transform_indices = @transform_1, window_bounds = array<i64: 128, 128>}, {transform_indices = @transform_2, window_bounds = array<i64: 128, 1>}, {pipeline_mode = #tpu.pipeline_mode<synchronous>, transform_indices = @transform_3, window_bounds = array<i64: 256, 128>}, {pipeline_mode = #tpu.pipeline_mode<synchronous>, transform_indices = @transform_4, window_bounds = array<i64: 1, 128>}, {transform_indices = @transform_5, window_bounds = array<i64: 128, 128>}]} {
    %c0_i32 = arith.constant 0 : i32
    %0 = arith.cmpi eq, %arg1, %c0_i32 : i32
    %1 = arith.extui %0 : i1 to i32
    %c0_i32_0 = arith.constant 0 : i32
    %2 = arith.cmpi ne, %1, %c0_i32_0 : i32
    scf.if %2 {
      %cst_9 = arith.constant 0.000000e+00 : f32
      %16 = vector.broadcast %cst_9 : f32 to vector<128x128xf32>
      %c0_10 = arith.constant 0 : index
      %c0_11 = arith.constant 0 : index
      %17 = vector.load %arg8[%c0_10, %c0_11] : memref<128x128xf32, #tpu.memory_space<vmem>>, vector<128x128xf32>
      tpu.vector_store %arg8[%c0_10, %c0_11], %16 {strides = array<i32>} : memref<128x128xf32, #tpu.memory_space<vmem>>, vector<128x128xf32>,
      %c128_i32_12 = arith.constant 128 : i32
      %18 = arith.muli %arg0, %c128_i32_12 : i32
      %19 = tpu.assume_multiple %18, 128 : i32
      %20 = arith.index_cast %19 : i32 to index
      %c0_13 = arith.constant 0 : index
      %21 = vector.load %arg3[%20, %c0_13] : memref<128x128xbf16, #tpu.memory_space<vmem>>, vector<128x128xbf16>
      %c128 = arith.constant 128 : index
      %c0_14 = arith.constant 0 : index
      %22 = vector.load %arg5[%c128, %c0_14] : memref<256x128xbf16, #tpu.memory_space<vmem>>, vector<128x128xbf16>
      %cst_15 = arith.constant dense<0.000000e+00> : vector<128x128xf32>
      %23 = tpu.matmul %21, %22, %cst_15 {dimension_numbers = #tpu.dot_dimension_numbers<[1], [0], [0], [1], [0, 0, 1, 1], [], []>} : vector<128x128xbf16>, vector<128x128xbf16>, vector<128x128xf32> -> vector<128x128xf32>
      %c0_16 = arith.constant 0 : index
      %c0_17 = arith.constant 0 : index
      %24 = vector.load %arg6[%c0_16, %c0_17] : memref<1x128xf32, #tpu.memory_space<vmem>>, vector<1x128xf32>
      %25 = vector.broadcast %24 : vector<1x128xf32> to vector<128x128xf32>
      %26 = arith.addf %23, %25 : vector<128x128xf32>
      %c0_18 = arith.constant 0 : index
      %c0_19 = arith.constant 0 : index
      %27 = vector.load %arg9[%c0_18, %c0_19] : memref<128x128xf32, #tpu.memory_space<vmem>>, vector<128x128xf32>
      tpu.vector_store %arg9[%c0_18, %c0_19], %26 {strides = array<i32>} : memref<128x128xf32, #tpu.memory_space<vmem>>, vector<128x128xf32>,
    } else {
    }
    %c128_i32 = arith.constant 128 : i32
    %3 = arith.muli %arg1, %c128_i32 : i32
    %4 = tpu.assume_multiple %3, 128 : i32
    %5 = arith.index_cast %4 : i32 to index
    %c0 = arith.constant 0 : index
    %6 = vector.load %arg3[%5, %c0] : memref<128x128xbf16, #tpu.memory_space<vmem>>, vector<128x128xbf16>
    %c0_1 = arith.constant 0 : index
    %c0_2 = arith.constant 0 : index
    %7 = vector.load %arg8[%c0_1, %c0_2] : memref<128x128xf32, #tpu.memory_space<vmem>>, vector<128x128xf32>
    %c0_3 = arith.constant 0 : index
    %c0_4 = arith.constant 0 : index
    %8 = vector.load %arg2[%c0_3, %c0_4] : memref<128x128xi8, #tpu.memory_space<vmem>>, vector<128x128xi8>
    %9 = arith.sitofp %8 : vector<128x128xi8> to vector<128x128xbf16>
    %cst = arith.constant dense<0.000000e+00> : vector<128x128xf32>
    %10 = tpu.matmul %9, %6, %cst {dimension_numbers = #tpu.dot_dimension_numbers<[1], [0], [0], [1], [0, 0, 1, 1], [], []>} : vector<128x128xbf16>, vector<128x128xbf16>, vector<128x128xf32> -> vector<128x128xf32>
    %11 = arith.addf %7, %10 : vector<128x128xf32>
    %c0_5 = arith.constant 0 : index
    %c0_6 = arith.constant 0 : index
    %12 = vector.load %arg8[%c0_5, %c0_6] : memref<128x128xf32, #tpu.memory_space<vmem>>, vector<128x128xf32>
    tpu.vector_store %arg8[%c0_5, %c0_6], %11 {strides = array<i32>} : memref<128x128xf32, #tpu.memory_space<vmem>>, vector<128x128xf32>,
    %c0_i32_7 = arith.constant 0 : i32
    %13 = arith.cmpi eq, %arg1, %c0_i32_7 : i32
    %14 = arith.extui %13 : i1 to i32
    %c0_i32_8 = arith.constant 0 : i32
    %15 = arith.cmpi ne, %14, %c0_i32_8 : i32
    scf.if %15 {
      %c0_9 = arith.constant 0 : index
      %c0_10 = arith.constant 0 : index
      %16 = vector.load %arg8[%c0_9, %c0_10] : memref<128x128xf32, #tpu.memory_space<vmem>>, vector<128x128xf32>
      %c0_11 = arith.constant 0 : index
      %c0_12 = arith.constant 0 : index
      %17 = vector.load %arg4[%c0_11, %c0_12] : memref<128x1xf32, #tpu.memory_space<vmem>>, vector<128x1xf32>
      %18 = vector.broadcast %17 : vector<128x1xf32> to vector<128x128xf32>
      %19 = arith.mulf %16, %18 : vector<128x128xf32>
      %20 = arith.truncf %19 : vector<128x128xf32> to vector<128x128xbf16>
      %c0_13 = arith.constant 0 : index
      %c0_14 = arith.constant 0 : index
      %21 = vector.load %arg9[%c0_13, %c0_14] : memref<128x128xf32, #tpu.memory_space<vmem>>, vector<128x128xf32>
      %c0_15 = arith.constant 0 : index
      %c0_16 = arith.constant 0 : index
      %22 = vector.load %arg5[%c0_15, %c0_16] : memref<256x128xbf16, #tpu.memory_space<vmem>>, vector<128x128xbf16>
      %cst_17 = arith.constant dense<0.000000e+00> : vector<128x128xf32>
      %23 = tpu.matmul %20, %22, %cst_17 {dimension_numbers = #tpu.dot_dimension_numbers<[1], [0], [0], [1], [0, 0, 1, 1], [], []>} : vector<128x128xbf16>, vector<128x128xbf16>, vector<128x128xf32> -> vector<128x128xf32>
      %24 = arith.addf %21, %23 : vector<128x128xf32>
      %cst_18 = arith.constant 0.000000e+00 : f32
      %25 = vector.broadcast %cst_18 : f32 to vector<128x128xf32>
      %26 = arith.maximumf %24, %25 : vector<128x128xf32>
      %27 = arith.truncf %26 : vector<128x128xf32> to vector<128x128xbf16>
      %c0_19 = arith.constant 0 : index
      %c0_20 = arith.constant 0 : index
      %28 = vector.load %arg7[%c0_19, %c0_20] : memref<128x128xbf16, #tpu.memory_space<vmem>>, vector<128x128xbf16>
      tpu.vector_store %arg7[%c0_19, %c0_20], %27 {strides = array<i32>} : memref<128x128xbf16, #tpu.memory_space<vmem>>, vector<128x128xbf16>,
    } else {
    }
    return
  }
  func.func @transform_0(%arg0: i32, %arg1: i32) -> (i32, i32) {
    %c0_i32 = arith.constant 0 : i32
    return %arg0, %arg1 : i32, i32
  }
  func.func @transform_1(%arg0: i32, %arg1: i32) -> (i32, i32) {
    %c0_i32 = arith.constant 0 : i32
    %c0_i32_0 = arith.constant 0 : i32
    %c0_i32_1 = arith.constant 0 : i32
    return %c0_i32, %c0_i32_0 : i32, i32
  }
  func.func @transform_2(%arg0: i32, %arg1: i32) -> (i32, i32) {
    %c0_i32 = arith.constant 0 : i32
    %c0_i32_0 = arith.constant 0 : i32
    return %arg0, %c0_i32 : i32, i32
  }
  func.func @transform_3(%arg0: i32, %arg1: i32) -> (i32, i32) {
    %c0_i32 = arith.constant 0 : i32
    %c0_i32_0 = arith.constant 0 : i32
    %c0_i32_1 = arith.constant 0 : i32
    return %c0_i32, %c0_i32_0 : i32, i32
  }
  func.func @transform_4(%arg0: i32, %arg1: i32) -> (i32, i32) {
    %c0_i32 = arith.constant 0 : i32
    %c0_i32_0 = arith.constant 0 : i32
    %c0_i32_1 = arith.constant 0 : i32
    return %c0_i32, %c0_i32_0 : i32, i32
  }
  func.func @transform_5(%arg0: i32, %arg1: i32) -> (i32, i32) {
    %c0_i32 = arith.constant 0 : i32
    %c0_i32_0 = arith.constant 0 : i32
    return %arg0, %c0_i32 : i32, i32
  }
}

</mosaic_0001>

<llo_original>
// kernel: tpu_custom_call.1
$region0: #{tpu_custom_call.1}
  #allocation0 [shape = 'u32[]', space=smem, size = 0x4, offset = 0x4, fixed_abs, tag = 'smem constant byte address 0x4 - core index']
  #allocation1 [shape = 'u32[72,128]{1,0:T(1,128)}', space=vmem, size = 0x9000, scoped, tag = 'internal scratch']
  #allocation2 [shape = 'f32[128,128]{1,0:T(8,128)}', space=vmem, size = 0x10000, scoped, tag = 'scratch operand']
  #allocation3 [shape = 'f32[128,128]{1,0:T(8,128)}', space=vmem, size = 0x10000, scoped, tag = 'scratch operand']
  %s0 = inlined_call_operand.hbm [shape: s8[128,128], index: 0, kind: input, shape index: {}]
  %s1 = inlined_call_operand.hbm [shape: bf16[128,128], index: 1, kind: input, shape index: {}]
  %s2 = inlined_call_operand.vmem [shape: f32[128,1], index: 2, kind: input, shape index: {}]
  %s3 = inlined_call_operand.vmem [shape: bf16[256,128], index: 3, kind: input, shape index: {}]
  %s4 = inlined_call_operand.vmem [shape: f32[1,128], index: 4, kind: input, shape index: {}]
  %s5 = inlined_call_operand.hbm [shape: bf16[128,128], index: 5, kind: output, shape index: {}]
  %s6 = sld [smem:[#allocation0]]
  $region46: #{tpu_custom_call.1} parent=0
    _
  %s8 = ssub.s32 1, %s6
  %s9 = scalar_select 0, %s8, %s6
  $region1: #{tpu_custom_call.1} parent=0
    #allocation4 [shape = 'u8[16384]{0}', space=vmem, size = 0x4000, scoped, tag = 'input window, operand 0, single buffered']
    #allocation5 [shape = 's32[1]{0}', space=sflag, size = 0x4, scoped, tag = 'scoped memory for tpu_custom_call.1']
    #allocation6 [shape = 's32[1]{0}', space=sflag, size = 0x4, scoped, tag = 'scoped memory for tpu_custom_call.1']
    #allocation7 [shape = 'u8[32768]{0}', space=vmem, size = 0x8000, scoped, tag = 'input window, operand 1, single buffered']
    #allocation8 [shape = 's32[1]{0}', space=sflag, size = 0x4, scoped, tag = 'scoped memory for tpu_custom_call.1']
    #allocation9 [shape = 'u8[32768]{0}', space=vmem, size = 0x8000, scoped, tag = 'output window, operand 0, single buffered']
    %10 = vsyncpa [#allocation5], 0
    %11 = vsyncpa [#allocation8], 0
    %12 = vsyncpa [#allocation6], 0
    // Predicated region
    $region2: #{tpu_custom_call.1} parent=1 // pred_check
      _
    $region3: #{tpu_custom_call.1} parent=1 // pred_check_branch
      %14 = sbr.rel (0) target = $region5
    $region4: #{tpu_custom_call.1} parent=1 // pred_region
      %16 = vsyncadd [#allocation5], 0
      %s17 = sshll.u32 %s0, 4
      %s18 = int_to_ptr.hbm [resolvable:$true] %s17
      %s19 = sshll.u32 [#allocation4], 4
      %s20 = int_to_ptr.vmem [resolvable:$true] %s19
      %25 = dma.hbm_to_vmem [thread:$0]  %s18, 512, %s20, [#allocation5], 128, 128, 8
    $region5: #{tpu_custom_call.1} parent=1 // pred_fallthru
      _
    // Predicated region
    $region6: #{tpu_custom_call.1} parent=1 // pred_check
      _
    $region7: #{tpu_custom_call.1} parent=1 // pred_check_branch
      %27 = sbr.rel (0) target = $region9
    $region8: #{tpu_custom_call.1} parent=1 // pred_region
      %29 = vsyncadd [#allocation8], 0
      %s30 = sshll.u32 %s1, 4
      %s31 = int_to_ptr.hbm [resolvable:$true] %s30
      %s32 = sshll.u32 [#allocation7], 4
      %s33 = int_to_ptr.vmem [resolvable:$true] %s32
      %38 = dma.hbm_to_vmem [thread:$0]  %s31, 1024, %s33, [#allocation8], 64, 64, 4
    $region9: #{tpu_custom_call.1} parent=1 // pred_fallthru
      _
    // Predicated region
    $region10: #{tpu_custom_call.1} parent=1 // pred_check
      _
    $region11: #{tpu_custom_call.1} parent=1 // pred_check_branch
      %40 = sbr.rel (0) target = $region13
    $region12: #{tpu_custom_call.1} parent=1 // pred_region
      _
    $region13: #{tpu_custom_call.1} parent=1 // pred_fallthru
      _
    // Predicated region
    $region14: #{tpu_custom_call.1} parent=1 // pred_check
      _
    $region15: #{tpu_custom_call.1} parent=1 // pred_check_branch
      %42 = sbr.rel (0) target = $region17
    $region16: #{tpu_custom_call.1} parent=1 // pred_region
      _
    $region17: #{tpu_custom_call.1} parent=1 // pred_fallthru
      _
    // Predicated region
    $region18: #{tpu_custom_call.1} parent=1 // pred_check
      _
    $region19: #{tpu_custom_call.1} parent=1 // pred_check_branch
      %44 = sbr.rel (0) target = $region21
    $region20: #{tpu_custom_call.1} parent=1 // pred_region
      _
    $region21: #{tpu_custom_call.1} parent=1 // pred_fallthru
      _
    // Predicated region
    $region22: #{tpu_custom_call.1} parent=1 // pred_check
      _
    $region23: #{tpu_custom_call.1} parent=1 // pred_check_branch
      %46 = sbr.rel (0) target = $region25
    $region24: #{tpu_custom_call.1} parent=1 // pred_region
      %48 = dma.done [#allocation5], 512
    $region25: #{tpu_custom_call.1} parent=1 // pred_fallthru
      _
    // Predicated region
    $region26: #{tpu_custom_call.1} parent=1 // pred_check
      _
    $region27: #{tpu_custom_call.1} parent=1 // pred_check_branch
      %50 = sbr.rel (0) target = $region29
    $region28: #{tpu_custom_call.1} parent=1 // pred_region
      %52 = dma.done [#allocation8], 1024
    $region29: #{tpu_custom_call.1} parent=1 // pred_fallthru
      _
    %p53 = scmp.eq.s32.totalorder 0, 0
    // Predicated region
    $region30: #{tpu_custom_call.1} parent=1 // pred_check
      %p54 = pneg %p53
    $region31: #{tpu_custom_call.1} parent=1 // pred_check_branch
      %56 = sbr.rel (%p54) target = $region33
    $region32: #{tpu_custom_call.1} parent=1 // pred_region
      %57 = vst [vmem:[#allocation2] sm:$0xff] 0.0
      %58 = vst [vmem:[#allocation2 + $0x8] sm:$0xff] 0.0
      %59 = vst [vmem:[#allocation2 + $0x10] sm:$0xff] 0.0
      %60 = vst [vmem:[#allocation2 + $0x18] sm:$0xff] 0.0
      %61 = vst [vmem:[#allocation2 + $0x20] sm:$0xff] 0.0
      %62 = vst [vmem:[#allocation2 + $0x28] sm:$0xff] 0.0
      %63 = vst [vmem:[#allocation2 + $0x30] sm:$0xff] 0.0
      %64 = vst [vmem:[#allocation2 + $0x38] sm:$0xff] 0.0
      %65 = vst [vmem:[#allocation2 + $0x40] sm:$0xff] 0.0
      %66 = vst [vmem:[#allocation2 + $0x48] sm:$0xff] 0.0
      %67 = vst [vmem:[#allocation2 + $0x50] sm:$0xff] 0.0
      %68 = vst [vmem:[#allocation2 + $0x58] sm:$0xff] 0.0
      %69 = vst [vmem:[#allocation2 + $0x60] sm:$0xff] 0.0
      %70 = vst [vmem:[#allocation2 + $0x68] sm:$0xff] 0.0
      %71 = vst [vmem:[#allocation2 + $0x70] sm:$0xff] 0.0
      %72 = vst [vmem:[#allocation2 + $0x78] sm:$0xff] 0.0
      %s73 = smul.u32 0, 128
      %s74 = sshra.s32 %s73, 3
      %s75 = sand.u32 %s73, 7
      %s76 = smul.addr %s74, 4
      %s77 = scalar_lea.vmem [#allocation7], %s76
      %v78 = vld [vmem:[%s77] sm:$0xf]
      %v79 = vld [vmem:[%s77 + $0x4] sm:$0xf]
      %v80 = vld [vmem:[%s77 + $0x8] sm:$0xf]
      %v81 = vld [vmem:[%s77 + $0xc] sm:$0xf]
      %v82 = vld [vmem:[%s77 + $0x10] sm:$0xf]
      %v83 = vld [vmem:[%s77 + $0x14] sm:$0xf]
      %v84 = vld [vmem:[%s77 + $0x18] sm:$0xf]
      %v85 = vld [vmem:[%s77 + $0x1c] sm:$0xf]
      %v86 = vld [vmem:[%s77 + $0x20] sm:$0xf]
      %v87 = vld [vmem:[%s77 + $0x24] sm:$0xf]
      %v88 = vld [vmem:[%s77 + $0x28] sm:$0xf]
      %v89 = vld [vmem:[%s77 + $0x2c] sm:$0xf]
      %v90 = vld [vmem:[%s77 + $0x30] sm:$0xf]
      %v91 = vld [vmem:[%s77 + $0x34] sm:$0xf]
      %v92 = vld [vmem:[%s77 + $0x38] sm:$0xf]
      %v93 = vld [vmem:[%s77 + $0x3c] sm:$0xf]
      %v94 = vld [vmem:[%s3 + $0x40] sm:$0xf]
      %v95 = vld [vmem:[%s3 + $0x44] sm:$0xf]
      %v96 = vld [vmem:[%s3 + $0x48] sm:$0xf]
      %v97 = vld [vmem:[%s3 + $0x4c] sm:$0xf]
      %v98 = vld [vmem:[%s3 + $0x50] sm:$0xf]
      %v99 = vld [vmem:[%s3 + $0x54] sm:$0xf]
      %v100 = vld [vmem:[%s3 + $0x58] sm:$0xf]
      %v101 = vld [vmem:[%s3 + $0x5c] sm:$0xf]
      %v102 = vld [vmem:[%s3 + $0x60] sm:$0xf]
      %v103 = vld [vmem:[%s3 + $0x64] sm:$0xf]
      %v104 = vld [vmem:[%s3 + $0x68] sm:$0xf]
      %v105 = vld [vmem:[%s3 + $0x6c] sm:$0xf]
      %v106 = vld [vmem:[%s3 + $0x70] sm:$0xf]
      %v107 = vld [vmem:[%s3 + $0x74] sm:$0xf]
      %v108 = vld [vmem:[%s3 + $0x78] sm:$0xf]
      %v109 = vld [vmem:[%s3 + $0x7c] sm:$0xf]
      %v110 = vld [vmem:[%s4] sm:$0x1]
      %v112 = vperm.slane %v110, 0
      %v130 = vunpack.c.l.b16 %v78
      %v131 = vunpack.c.l.b16 %v79
      %v132 = vunpack.c.l.b16 %v80
      %v133 = vunpack.c.l.b16 %v81
      %v134 = vunpack.c.l.b16 %v82
      %v135 = vunpack.c.l.b16 %v83
      %v136 = vunpack.c.l.b16 %v84
      %v137 = vunpack.c.l.b16 %v85
      %v138 = vunpack.c.l.b16 %v86
      %v139 = vunpack.c.l.b16 %v87
      %v140 = vunpack.c.l.b16 %v88
      %v141 = vunpack.c.l.b16 %v89
      %v142 = vunpack.c.l.b16 %v90
      %v143 = vunpack.c.l.b16 %v91
      %v144 = vunpack.c.l.b16 %v92
      %v145 = vunpack.c.l.b16 %v93
      %v146 = vpack.c.b16 %v131, %v130
      %v147 = vpack.c.b16 %v133, %v132
      %v148 = vpack.c.b16 %v135, %v134
      %v149 = vpack.c.b16 %v137, %v136
      %v150 = vpack.c.b16 %v139, %v138
      %v151 = vpack.c.b16 %v141, %v140
      %v152 = vpack.c.b16 %v143, %v142
      %v153 = vpack.c.b16 %v145, %v144
      %v178 = vunpack.c.l.b16 %v94
      %v179 = vunpack.c.l.b16 %v95
      %v180 = vunpack.c.l.b16 %v96
      %v181 = vunpack.c.l.b16 %v97
      %v182 = vunpack.c.l.b16 %v98
      %v183 = vunpack.c.l.b16 %v99
      %v184 = vunpack.c.l.b16 %v100
      %v185 = vunpack.c.l.b16 %v101
      %v186 = vunpack.c.l.b16 %v102
      %v187 = vunpack.c.l.b16 %v103
      %v188 = vunpack.c.l.b16 %v104
      %v189 = vunpack.c.l.b16 %v105
      %v190 = vunpack.c.l.b16 %v106
      %v191 = vunpack.c.l.b16 %v107
      %v192 = vunpack.c.l.b16 %v108
      %v193 = vunpack.c.l.b16 %v109
      %v194 = vpack.c.b16 %v179, %v178
      %v195 = vpack.c.b16 %v181, %v180
      %v196 = vpack.c.b16 %v183, %v182
      %v197 = vpack.c.b16 %v185, %v184
      %v198 = vpack.c.b16 %v187, %v186
      %v199 = vpack.c.b16 %v189, %v188
      %v200 = vpack.c.b16 %v191, %v190
      %v201 = vpack.c.b16 %v193, %v192
      %210 = vmatpush.bf16.msra.mxu0 %v201
      %211 = vmatpush.bf16.msra.mxu0 %v200
      %212 = vmatpush.bf16.msra.mxu0 %v199
      %213 = vmatpush.bf16.msra.mxu0 %v198
      %214 = vmatpush.bf16.msra.mxu0 %v197
      %215 = vmatpush.bf16.msra.mxu0 %v196
      %216 = vmatpush.bf16.msra.mxu0 %v195
      %217 = vmatpush.bf16.msra.mxu0 %v194
      %218 = vmatmul.bf16.gmra.mxu0 %v146
      %v219 = vpop.f32.mrf.mxu0
      %v220 = vadd.f32 %v112, %v219
      %v221 = vpop.f32.mrf.mxu0
      %v222 = vadd.f32 %v112, %v221
      %223 = vmatmul.bf16.gmra.mxu0 %v147
      %v224 = vpop.f32.mrf.mxu0
      %v225 = vadd.f32 %v112, %v224
      %v226 = vpop.f32.mrf.mxu0
      %v227 = vadd.f32 %v112, %v226
      %228 = vmatmul.bf16.gmra.mxu0 %v148
      %v229 = vpop.f32.mrf.mxu0
      %v230 = vadd.f32 %v112, %v229
      %v231 = vpop.f32.mrf.mxu0
      %v232 = vadd.f32 %v112, %v231
      %233 = vmatmul.bf16.gmra.mxu0 %v149
      %v234 = vpop.f32.mrf.mxu0
      %v235 = vadd.f32 %v112, %v234
      %v236 = vpop.f32.mrf.mxu0
      %v237 = vadd.f32 %v112, %v236
      %238 = vmatmul.bf16.gmra.mxu0 %v150
      %v239 = vpop.f32.mrf.mxu0
      %v240 = vadd.f32 %v112, %v239
      %v241 = vpop.f32.mrf.mxu0
      %v242 = vadd.f32 %v112, %v241
      %243 = vmatmul.bf16.gmra.mxu0 %v151
      %v244 = vpop.f32.mrf.mxu0
      %v245 = vadd.f32 %v112, %v244
      %v246 = vpop.f32.mrf.mxu0
      %v247 = vadd.f32 %v112, %v246
      %248 = vmatmul.bf16.gmra.mxu0 %v152
      %v249 = vpop.f32.mrf.mxu0
      %v250 = vadd.f32 %v112, %v249
      %v251 = vpop.f32.mrf.mxu0
      %v252 = vadd.f32 %v112, %v251
      %253 = vmatmul.bf16.gmra.mxu0 %v153
      %v254 = vpop.f32.mrf.mxu0
      %v255 = vadd.f32 %v112, %v254
      %v256 = vpop.f32.mrf.mxu0
      %v257 = vadd.f32 %v112, %v256
      %258 = vdwg.mxu0
      %259 = vst [vmem:[#allocation3] sm:$0xff] %v220
      %260 = vst [vmem:[#allocation3 + $0x8] sm:$0xff] %v222
      %261 = vst [vmem:[#allocation3 + $0x10] sm:$0xff] %v225
      %262 = vst [vmem:[#allocation3 + $0x18] sm:$0xff] %v227
      %263 = vst [vmem:[#allocation3 + $0x20] sm:$0xff] %v230
      %264 = vst [vmem:[#allocation3 + $0x28] sm:$0xff] %v232
      %265 = vst [vmem:[#allocation3 + $0x30] sm:$0xff] %v235
      %266 = vst [vmem:[#allocation3 + $0x38] sm:$0xff] %v237
      %267 = vst [vmem:[#allocation3 + $0x40] sm:$0xff] %v240
      %268 = vst [vmem:[#allocation3 + $0x48] sm:$0xff] %v242
      %269 = vst [vmem:[#allocation3 + $0x50] sm:$0xff] %v245
      %270 = vst [vmem:[#allocation3 + $0x58] sm:$0xff] %v247
      %271 = vst [vmem:[#allocation3 + $0x60] sm:$0xff] %v250
      %272 = vst [vmem:[#allocation3 + $0x68] sm:$0xff] %v252
      %273 = vst [vmem:[#allocation3 + $0x70] sm:$0xff] %v255
      %274 = vst [vmem:[#allocation3 + $0x78] sm:$0xff] %v257
    $region33: #{tpu_custom_call.1} parent=1 // pred_fallthru
      _
    %s275 = smul.u32 0, 128
    %s276 = sshra.s32 %s275, 3
    %s277 = sand.u32 %s275, 7
    %s278 = smul.addr %s276, 4
    %s279 = scalar_lea.vmem [#allocation7], %s278
    %v280 = vld [vmem:[%s279] sm:$0xf]
    %v281 = vld [vmem:[%s279 + $0x4] sm:$0xf]
    %v282 = vld [vmem:[%s279 + $0x8] sm:$0xf]
    %v283 = vld [vmem:[%s279 + $0xc] sm:$0xf]
    %v284 = vld [vmem:[%s279 + $0x10] sm:$0xf]
    %v285 = vld [vmem:[%s279 + $0x14] sm:$0xf]
    %v286 = vld [vmem:[%s279 + $0x18] sm:$0xf]
    %v287 = vld [vmem:[%s279 + $0x1c] sm:$0xf]
    %v288 = vld [vmem:[%s279 + $0x20] sm:$0xf]
    %v289 = vld [vmem:[%s279 + $0x24] sm:$0xf]
    %v290 = vld [vmem:[%s279 + $0x28] sm:$0xf]
    %v291 = vld [vmem:[%s279 + $0x2c] sm:$0xf]
    %v292 = vld [vmem:[%s279 + $0x30] sm:$0xf]
    %v293 = vld [vmem:[%s279 + $0x34] sm:$0xf]
    %v294 = vld [vmem:[%s279 + $0x38] sm:$0xf]
    %v295 = vld [vmem:[%s279 + $0x3c] sm:$0xf]
    %v296 = vld [vmem:[#allocation2] sm:$0xff]
    %v297 = vld [vmem:[#allocation2 + $0x8] sm:$0xff]
    %v298 = vld [vmem:[#allocation2 + $0x10] sm:$0xff]
    %v299 = vld [vmem:[#allocation2 + $0x18] sm:$0xff]
    %v300 = vld [vmem:[#allocation2 + $0x20] sm:$0xff]
    %v301 = vld [vmem:[#allocation2 + $0x28] sm:$0xff]
    %v302 = vld [vmem:[#allocation2 + $0x30] sm:$0xff]
    %v303 = vld [vmem:[#allocation2 + $0x38] sm:$0xff]
    %v304 = vld [vmem:[#allocation2 + $0x40] sm:$0xff]
    %v305 = vld [vmem:[#allocation2 + $0x48] sm:$0xff]
    %v306 = vld [vmem:[#allocation2 + $0x50] sm:$0xff]
    %v307 = vld [vmem:[#allocation2 + $0x58] sm:$0xff]
    %v308 = vld [vmem:[#allocation2 + $0x60] sm:$0xff]
    %v309 = vld [vmem:[#allocation2 + $0x68] sm:$0xff]
    %v310 = vld [vmem:[#allocation2 + $0x70] sm:$0xff]
    %v311 = vld [vmem:[#allocation2 + $0x78] sm:$0xff]
    %v312 = vld [vmem:[#allocation4] sm:$0xff]
    %v313 = vld [vmem:[#allocation4 + $0x8] sm:$0xff]
    %v314 = vld [vmem:[#allocation4 + $0x10] sm:$0xff]
    %v315 = vld [vmem:[#allocation4 + $0x18] sm:$0xff]
    %v316 = vunpack.c.0.s8 %v312
    %v317 = vunpack.c.1.s8 %v312
    %v318 = vunpack.c.2.s8 %v312
    %v319 = vunpack.c.3.s8 %v312
    %v320 = vunpack.c.0.s8 %v313
    %v321 = vunpack.c.1.s8 %v313
    %v322 = vunpack.c.2.s8 %v313
    %v323 = vunpack.c.3.s8 %v313
    %v324 = vunpack.c.0.s8 %v314
    %v325 = vunpack.c.1.s8 %v314
    %v326 = vunpack.c.2.s8 %v314
    %v327 = vunpack.c.3.s8 %v314
    %v328 = vunpack.c.0.s8 %v315
    %v329 = vunpack.c.1.s8 %v315
    %v330 = vunpack.c.2.s8 %v315
    %v331 = vunpack.c.3.s8 %v315
    %v332 = vcvt.s32.f32 %v316
    %v333 = vcvt.s32.f32 %v317
    %v334 = vcvt.s32.f32 %v318
    %v335 = vcvt.s32.f32 %v319
    %v336 = vcvt.s32.f32 %v320
    %v337 = vcvt.s32.f32 %v321
    %v338 = vcvt.s32.f32 %v322
    %v339 = vcvt.s32.f32 %v323
    %v340 = vcvt.s32.f32 %v324
    %v341 = vcvt.s32.f32 %v325
    %v342 = vcvt.s32.f32 %v326
    %v343 = vcvt.s32.f32 %v327
    %v344 = vcvt.s32.f32 %v328
    %v345 = vcvt.s32.f32 %v329
    %v346 = vcvt.s32.f32 %v330
    %v347 = vcvt.s32.f32 %v331
    %v348 = vpack.c.bf16 %v333, %v332
    %v349 = vpack.c.bf16 %v335, %v334
    %v350 = vpack.c.bf16 %v337, %v336
    %v351 = vpack.c.bf16 %v339, %v338
    %v352 = vpack.c.bf16 %v341, %v340
    %v353 = vpack.c.bf16 %v343, %v342
    %v354 = vpack.c.bf16 %v345, %v344
    %v355 = vpack.c.bf16 %v347, %v346
    %v372 = vunpack.c.l.b16 %v280
    %v373 = vunpack.c.l.b16 %v281
    %v374 = vunpack.c.l.b16 %v282
    %v375 = vunpack.c.l.b16 %v283
    %v376 = vunpack.c.l.b16 %v284
    %v377 = vunpack.c.l.b16 %v285
    %v378 = vunpack.c.l.b16 %v286
    %v379 = vunpack.c.l.b16 %v287
    %v380 = vunpack.c.l.b16 %v288
    %v381 = vunpack.c.l.b16 %v289
    %v382 = vunpack.c.l.b16 %v290
    %v383 = vunpack.c.l.b16 %v291
    %v384 = vunpack.c.l.b16 %v292
    %v385 = vunpack.c.l.b16 %v293
    %v386 = vunpack.c.l.b16 %v294
    %v387 = vunpack.c.l.b16 %v295
    %v388 = vpack.c.b16 %v373, %v372
    %v389 = vpack.c.b16 %v375, %v374
    %v390 = vpack.c.b16 %v377, %v376
    %v391 = vpack.c.b16 %v379, %v378
    %v392 = vpack.c.b16 %v381, %v380
    %v393 = vpack.c.b16 %v383, %v382
    %v394 = vpack.c.b16 %v385, %v384
    %v395 = vpack.c.b16 %v387, %v386
    %404 = vmatpush.bf16.msra.mxu0 %v395
    %405 = vmatpush.bf16.msra.mxu0 %v394
    %406 = vmatpush.bf16.msra.mxu0 %v393
    %407 = vmatpush.bf16.msra.mxu0 %v392
    %408 = vmatpush.bf16.msra.mxu0 %v391
    %409 = vmatpush.bf16.msra.mxu0 %v390
    %410 = vmatpush.bf16.msra.mxu0 %v389
    %411 = vmatpush.bf16.msra.mxu0 %v388
    %412 = vmatmul.bf16.gmra.mxu0 %v348
    %v413 = vpop.f32.mrf.mxu0
    %v414 = vadd.f32 0.0, %v413
    %v415 = vpop.f32.mrf.mxu0
    %v416 = vadd.f32 0.0, %v415
    %417 = vmatmul.bf16.gmra.mxu0 %v349
    %v418 = vpop.f32.mrf.mxu0
    %v419 = vadd.f32 0.0, %v418
    %v420 = vpop.f32.mrf.mxu0
    %v421 = vadd.f32 0.0, %v420
    %422 = vmatmul.bf16.gmra.mxu0 %v350
    %v423 = vpop.f32.mrf.mxu0
    %v424 = vadd.f32 0.0, %v423
    %v425 = vpop.f32.mrf.mxu0
    %v426 = vadd.f32 0.0, %v425
    %427 = vmatmul.bf16.gmra.mxu0 %v351
    %v428 = vpop.f32.mrf.mxu0
    %v429 = vadd.f32 0.0, %v428
    %v430 = vpop.f32.mrf.mxu0
    %v431 = vadd.f32 0.0, %v430
    %432 = vmatmul.bf16.gmra.mxu0 %v352
    %v433 = vpop.f32.mrf.mxu0
    %v434 = vadd.f32 0.0, %v433
    %v435 = vpop.f32.mrf.mxu0
    %v436 = vadd.f32 0.0, %v435
    %437 = vmatmul.bf16.gmra.mxu0 %v353
    %v438 = vpop.f32.mrf.mxu0
    %v439 = vadd.f32 0.0, %v438
    %v440 = vpop.f32.mrf.mxu0
    %v441 = vadd.f32 0.0, %v440
    %442 = vmatmul.bf16.gmra.mxu0 %v354
    %v443 = vpop.f32.mrf.mxu0
    %v444 = vadd.f32 0.0, %v443
    %v445 = vpop.f32.mrf.mxu0
    %v446 = vadd.f32 0.0, %v445
    %447 = vmatmul.bf16.gmra.mxu0 %v355
    %v448 = vpop.f32.mrf.mxu0
    %v449 = vadd.f32 0.0, %v448
    %v450 = vpop.f32.mrf.mxu0
    %v451 = vadd.f32 0.0, %v450
    %452 = vdwg.mxu0
    %v453 = vadd.f32 %v296, %v414
    %v454 = vadd.f32 %v297, %v416
    %v455 = vadd.f32 %v298, %v419
    %v456 = vadd.f32 %v299, %v421
    %v457 = vadd.f32 %v300, %v424
    %v458 = vadd.f32 %v301, %v426
    %v459 = vadd.f32 %v302, %v429
    %v460 = vadd.f32 %v303, %v431
    %v461 = vadd.f32 %v304, %v434
    %v462 = vadd.f32 %v305, %v436
    %v463 = vadd.f32 %v306, %v439
    %v464 = vadd.f32 %v307, %v441
    %v465 = vadd.f32 %v308, %v444
    %v466 = vadd.f32 %v309, %v446
    %v467 = vadd.f32 %v310, %v449
    %v468 = vadd.f32 %v311, %v451
    %469 = vst [vmem:[#allocation2] sm:$0xff] %v453
    %470 = vst [vmem:[#allocation2 + $0x8] sm:$0xff] %v454
    %471 = vst [vmem:[#allocation2 + $0x10] sm:$0xff] %v455
    %472 = vst [vmem:[#allocation2 + $0x18] sm:$0xff] %v456
    %473 = vst [vmem:[#allocation2 + $0x20] sm:$0xff] %v457
    %474 = vst [vmem:[#allocation2 + $0x28] sm:$0xff] %v458
    %475 = vst [vmem:[#allocation2 + $0x30] sm:$0xff] %v459
    %476 = vst [vmem:[#allocation2 + $0x38] sm:$0xff] %v460
    %477 = vst [vmem:[#allocation2 + $0x40] sm:$0xff] %v461
    %478 = vst [vmem:[#allocation2 + $0x48] sm:$0xff] %v462
    %479 = vst [vmem:[#allocation2 + $0x50] sm:$0xff] %v463
    %480 = vst [vmem:[#allocation2 + $0x58] sm:$0xff] %v464
    %481 = vst [vmem:[#allocation2 + $0x60] sm:$0xff] %v465
    %482 = vst [vmem:[#allocation2 + $0x68] sm:$0xff] %v466
    %483 = vst [vmem:[#allocation2 + $0x70] sm:$0xff] %v467
    %484 = vst [vmem:[#allocation2 + $0x78] sm:$0xff] %v468
    // Predicated region
    $region34: #{tpu_custom_call.1} parent=1 // pred_check
      %p485 = pneg %p53
    $region35: #{tpu_custom_call.1} parent=1 // pred_check_branch
      %487 = sbr.rel (%p485) target = $region37
    $region36: #{tpu_custom_call.1} parent=1 // pred_region
      %v488 = vld [vmem:[#allocation2] sm:$0xff]
      %v489 = vld [vmem:[#allocation2 + $0x8] sm:$0xff]
      %v490 = vld [vmem:[#allocation2 + $0x10] sm:$0xff]
      %v491 = vld [vmem:[#allocation2 + $0x18] sm:$0xff]
      %v492 = vld [vmem:[#allocation2 + $0x20] sm:$0xff]
      %v493 = vld [vmem:[#allocation2 + $0x28] sm:$0xff]
      %v494 = vld [vmem:[#allocation2 + $0x30] sm:$0xff]
      %v495 = vld [vmem:[#allocation2 + $0x38] sm:$0xff]
      %v496 = vld [vmem:[#allocation2 + $0x40] sm:$0xff]
      %v497 = vld [vmem:[#allocation2 + $0x48] sm:$0xff]
      %v498 = vld [vmem:[#allocation2 + $0x50] sm:$0xff]
      %v499 = vld [vmem:[#allocation2 + $0x58] sm:$0xff]
      %v500 = vld [vmem:[#allocation2 + $0x60] sm:$0xff]
      %v501 = vld [vmem:[#allocation2 + $0x68] sm:$0xff]
      %v502 = vld [vmem:[#allocation2 + $0x70] sm:$0xff]
      %v503 = vld [vmem:[#allocation2 + $0x78] sm:$0xff]
      %v504 = vld [vmem:[%s2] sm:$0xff]
      %v505 = vld [vmem:[%s2 + $0x8] sm:$0xff]
      %v506 = vld [vmem:[%s2 + $0x10] sm:$0xff]
      %v507 = vld [vmem:[%s2 + $0x18] sm:$0xff]
      %v508 = vld [vmem:[%s2 + $0x20] sm:$0xff]
      %v509 = vld [vmem:[%s2 + $0x28] sm:$0xff]
      %v510 = vld [vmem:[%s2 + $0x30] sm:$0xff]
      %v511 = vld [vmem:[%s2 + $0x38] sm:$0xff]
      %v512 = vld [vmem:[%s2 + $0x40] sm:$0xff]
      %v513 = vld [vmem:[%s2 + $0x48] sm:$0xff]
      %v514 = vld [vmem:[%s2 + $0x50] sm:$0xff]
      %v515 = vld [vmem:[%s2 + $0x58] sm:$0xff]
      %v516 = vld [vmem:[%s2 + $0x60] sm:$0xff]
      %v517 = vld [vmem:[%s2 + $0x68] sm:$0xff]
      %v518 = vld [vmem:[%s2 + $0x70] sm:$0xff]
      %v519 = vld [vmem:[%s2 + $0x78] sm:$0xff]
      %521 = vset.pattern.permute.xlu0 0
      %522 = vperm.xlu0 %521, %v504
      %v523 = vpop.permute.xlu0 %522
      %526 = vset.pattern.permute.xlu0 0
      %527 = vperm.xlu0 %526, %v505
      %v528 = vpop.permute.xlu0 %527
      %531 = vset.pattern.permute.xlu0 0
      %532 = vperm.xlu0 %531, %v506
      %v533 = vpop.permute.xlu0 %532
      %536 = vset.pattern.permute.xlu0 0
      %537 = vperm.xlu0 %536, %v507
      %v538 = vpop.permute.xlu0 %537
      %541 = vset.pattern.permute.xlu0 0
      %542 = vperm.xlu0 %541, %v508
      %v543 = vpop.permute.xlu0 %542
      %546 = vset.pattern.permute.xlu0 0
      %547 = vperm.xlu0 %546, %v509
      %v548 = vpop.permute.xlu0 %547
      %551 = vset.pattern.permute.xlu0 0
      %552 = vperm.xlu0 %551, %v510
      %v553 = vpop.permute.xlu0 %552
      %556 = vset.pattern.permute.xlu0 0
      %557 = vperm.xlu0 %556, %v511
      %v558 = vpop.permute.xlu0 %557
      %561 = vset.pattern.permute.xlu0 0
      %562 = vperm.xlu0 %561, %v512
      %v563 = vpop.permute.xlu0 %562
      %566 = vset.pattern.permute.xlu0 0
      %567 = vperm.xlu0 %566, %v513
      %v568 = vpop.permute.xlu0 %567
      %571 = vset.pattern.permute.xlu0 0
      %572 = vperm.xlu0 %571, %v514
      %v573 = vpop.permute.xlu0 %572
      %576 = vset.pattern.permute.xlu0 0
      %577 = vperm.xlu0 %576, %v515
      %v578 = vpop.permute.xlu0 %577
      %581 = vset.pattern.permute.xlu0 0
      %582 = vperm.xlu0 %581, %v516
      %v583 = vpop.permute.xlu0 %582
      %586 = vset.pattern.permute.xlu0 0
      %587 = vperm.xlu0 %586, %v517
      %v588 = vpop.permute.xlu0 %587
      %591 = vset.pattern.permute.xlu0 0
      %592 = vperm.xlu0 %591, %v518
      %v593 = vpop.permute.xlu0 %592
      %596 = vset.pattern.permute.xlu0 0
      %597 = vperm.xlu0 %596, %v519
      %v598 = vpop.permute.xlu0 %597
      %v600 = vmul.f32 %v488, %v523
      %v601 = vmul.f32 %v489, %v528
      %v602 = vmul.f32 %v490, %v533
      %v603 = vmul.f32 %v491, %v538
      %v604 = vmul.f32 %v492, %v543
      %v605 = vmul.f32 %v493, %v548
      %v606 = vmul.f32 %v494, %v553
      %v607 = vmul.f32 %v495, %v558
      %v608 = vmul.f32 %v496, %v563
      %v609 = vmul.f32 %v497, %v568
      %v610 = vmul.f32 %v498, %v573
      %v611 = vmul.f32 %v499, %v578
      %v612 = vmul.f32 %v500, %v583
      %v613 = vmul.f32 %v501, %v588
      %v614 = vmul.f32 %v502, %v593
      %v615 = vmul.f32 %v503, %v598
      %v616 = vpack.c.bf16 %v601, %v600
      %v617 = vpack.c.bf16 %v603, %v602
      %v618 = vpack.c.bf16 %v605, %v604
      %v619 = vpack.c.bf16 %v607, %v606
      %v620 = vpack.c.bf16 %v609, %v608
      %v621 = vpack.c.bf16 %v611, %v610
      %v622 = vpack.c.bf16 %v613, %v612
      %v623 = vpack.c.bf16 %v615, %v614
      %v624 = vld [vmem:[#allocation3] sm:$0xff]
      %v625 = vld [vmem:[#allocation3 + $0x8] sm:$0xff]
      %v626 = vld [vmem:[#allocation3 + $0x10] sm:$0xff]
      %v627 = vld [vmem:[#allocation3 + $0x18] sm:$0xff]
      %v628 = vld [vmem:[#allocation3 + $0x20] sm:$0xff]
      %v629 = vld [vmem:[#allocation3 + $0x28] sm:$0xff]
      %v630 = vld [vmem:[#allocation3 + $0x30] sm:$0xff]
      %v631 = vld [vmem:[#allocation3 + $0x38] sm:$0xff]
      %v632 = vld [vmem:[#allocation3 + $0x40] sm:$0xff]
      %v633 = vld [vmem:[#allocation3 + $0x48] sm:$0xff]
      %v634 = vld [vmem:[#allocation3 + $0x50] sm:$0xff]
      %v635 = vld [vmem:[#allocation3 + $0x58] sm:$0xff]
      %v636 = vld [vmem:[#allocation3 + $0x60] sm:$0xff]
      %v637 = vld [vmem:[#allocation3 + $0x68] sm:$0xff]
      %v638 = vld [vmem:[#allocation3 + $0x70] sm:$0xff]
      %v639 = vld [vmem:[#allocation3 + $0x78] sm:$0xff]
      %v640 = vld [vmem:[%s3] sm:$0xf]
      %v641 = vld [vmem:[%s3 + $0x4] sm:$0xf]
      %v642 = vld [vmem:[%s3 + $0x8] sm:$0xf]
      %v643 = vld [vmem:[%s3 + $0xc] sm:$0xf]
      %v644 = vld [vmem:[%s3 + $0x10] sm:$0xf]
      %v645 = vld [vmem:[%s3 + $0x14] sm:$0xf]
      %v646 = vld [vmem:[%s3 + $0x18] sm:$0xf]
      %v647 = vld [vmem:[%s3 + $0x1c] sm:$0xf]
      %v648 = vld [vmem:[%s3 + $0x20] sm:$0xf]
      %v649 = vld [vmem:[%s3 + $0x24] sm:$0xf]
      %v650 = vld [vmem:[%s3 + $0x28] sm:$0xf]
      %v651 = vld [vmem:[%s3 + $0x2c] sm:$0xf]
      %v652 = vld [vmem:[%s3 + $0x30] sm:$0xf]
      %v653 = vld [vmem:[%s3 + $0x34] sm:$0xf]
      %v654 = vld [vmem:[%s3 + $0x38] sm:$0xf]
      %v655 = vld [vmem:[%s3 + $0x3c] sm:$0xf]
      %v672 = vunpack.c.l.b16 %v640
      %v673 = vunpack.c.l.b16 %v641
      %v674 = vunpack.c.l.b16 %v642
      %v675 = vunpack.c.l.b16 %v643
      %v676 = vunpack.c.l.b16 %v644
      %v677 = vunpack.c.l.b16 %v645
      %v678 = vunpack.c.l.b16 %v646
      %v679 = vunpack.c.l.b16 %v647
      %v680 = vunpack.c.l.b16 %v648
      %v681 = vunpack.c.l.b16 %v649
      %v682 = vunpack.c.l.b16 %v650
      %v683 = vunpack.c.l.b16 %v651
      %v684 = vunpack.c.l.b16 %v652
      %v685 = vunpack.c.l.b16 %v653
      %v686 = vunpack.c.l.b16 %v654
      %v687 = vunpack.c.l.b16 %v655
      %v688 = vpack.c.b16 %v673, %v672
      %v689 = vpack.c.b16 %v675, %v674
      %v690 = vpack.c.b16 %v677, %v676
      %v691 = vpack.c.b16 %v679, %v678
      %v692 = vpack.c.b16 %v681, %v680
      %v693 = vpack.c.b16 %v683, %v682
      %v694 = vpack.c.b16 %v685, %v684
      %v695 = vpack.c.b16 %v687, %v686
      %704 = vmatpush.bf16.msra.mxu0 %v695
      %705 = vmatpush.bf16.msra.mxu0 %v694
      %706 = vmatpush.bf16.msra.mxu0 %v693
      %707 = vmatpush.bf16.msra.mxu0 %v692
      %708 = vmatpush.bf16.msra.mxu0 %v691
      %709 = vmatpush.bf16.msra.mxu0 %v690
      %710 = vmatpush.bf16.msra.mxu0 %v689
      %711 = vmatpush.bf16.msra.mxu0 %v688
      %712 = vmatmul.bf16.gmra.mxu0 %v616
      %v713 = vpop.f32.mrf.mxu0
      %v714 = vadd.f32 0.0, %v713
      %v715 = vpop.f32.mrf.mxu0
      %v716 = vadd.f32 0.0, %v715
      %717 = vmatmul.bf16.gmra.mxu0 %v617
      %v718 = vpop.f32.mrf.mxu0
      %v719 = vadd.f32 0.0, %v718
      %v720 = vpop.f32.mrf.mxu0
      %v721 = vadd.f32 0.0, %v720
      %722 = vmatmul.bf16.gmra.mxu0 %v618
      %v723 = vpop.f32.mrf.mxu0
      %v724 = vadd.f32 0.0, %v723
      %v725 = vpop.f32.mrf.mxu0
      %v726 = vadd.f32 0.0, %v725
      %727 = vmatmul.bf16.gmra.mxu0 %v619
      %v728 = vpop.f32.mrf.mxu0
      %v729 = vadd.f32 0.0, %v728
      %v730 = vpop.f32.mrf.mxu0
      %v731 = vadd.f32 0.0, %v730
      %732 = vmatmul.bf16.gmra.mxu0 %v620
      %v733 = vpop.f32.mrf.mxu0
      %v734 = vadd.f32 0.0, %v733
      %v735 = vpop.f32.mrf.mxu0
      %v736 = vadd.f32 0.0, %v735
      %737 = vmatmul.bf16.gmra.mxu0 %v621
      %v738 = vpop.f32.mrf.mxu0
      %v739 = vadd.f32 0.0, %v738
      %v740 = vpop.f32.mrf.mxu0
      %v741 = vadd.f32 0.0, %v740
      %742 = vmatmul.bf16.gmra.mxu0 %v622
      %v743 = vpop.f32.mrf.mxu0
      %v744 = vadd.f32 0.0, %v743
      %v745 = vpop.f32.mrf.mxu0
      %v746 = vadd.f32 0.0, %v745
      %747 = vmatmul.bf16.gmra.mxu0 %v623
      %v748 = vpop.f32.mrf.mxu0
      %v749 = vadd.f32 0.0, %v748
      %v750 = vpop.f32.mrf.mxu0
      %v751 = vadd.f32 0.0, %v750
      %752 = vdwg.mxu0
      %v753 = vadd.f32 %v624, %v714
      %v754 = vadd.f32 %v625, %v716
      %v755 = vadd.f32 %v626, %v719
      %v756 = vadd.f32 %v627, %v721
      %v757 = vadd.f32 %v628, %v724
      %v758 = vadd.f32 %v629, %v726
      %v759 = vadd.f32 %v630, %v729
      %v760 = vadd.f32 %v631, %v731
      %v761 = vadd.f32 %v632, %v734
      %v762 = vadd.f32 %v633, %v736
      %v763 = vadd.f32 %v634, %v739
      %v764 = vadd.f32 %v635, %v741
      %v765 = vadd.f32 %v636, %v744
      %v766 = vadd.f32 %v637, %v746
      %v767 = vadd.f32 %v638, %v749
      %v768 = vadd.f32 %v639, %v751
      %v769 = vmax.f32 %v753, 0.0
      %v770 = vmax.f32 %v754, 0.0
      %v771 = vmax.f32 %v755, 0.0
      %v772 = vmax.f32 %v756, 0.0
      %v773 = vmax.f32 %v757, 0.0
      %v774 = vmax.f32 %v758, 0.0
      %v775 = vmax.f32 %v759, 0.0
      %v776 = vmax.f32 %v760, 0.0
      %v777 = vmax.f32 %v761, 0.0
      %v778 = vmax.f32 %v762, 0.0
      %v779 = vmax.f32 %v763, 0.0
      %v780 = vmax.f32 %v764, 0.0
      %v781 = vmax.f32 %v765, 0.0
      %v782 = vmax.f32 %v766, 0.0
      %v783 = vmax.f32 %v767, 0.0
      %v784 = vmax.f32 %v768, 0.0
      %v785 = vpack.c.bf16 %v769, %v769
      %v786 = vpack.c.bf16 %v770, %v770
      %v787 = vpack.c.bf16 %v771, %v771
      %v788 = vpack.c.bf16 %v772, %v772
      %v789 = vpack.c.bf16 %v773, %v773
      %v790 = vpack.c.bf16 %v774, %v774
      %v791 = vpack.c.bf16 %v775, %v775
      %v792 = vpack.c.bf16 %v776, %v776
      %v793 = vpack.c.bf16 %v777, %v777
      %v794 = vpack.c.bf16 %v778, %v778
      %v795 = vpack.c.bf16 %v779, %v779
      %v796 = vpack.c.bf16 %v780, %v780
      %v797 = vpack.c.bf16 %v781, %v781
      %v798 = vpack.c.bf16 %v782, %v782
      %v799 = vpack.c.bf16 %v783, %v783
      %v800 = vpack.c.bf16 %v784, %v784
      %801 = vst [vmem:[#allocation9] sm:$0xf] %v785
      %802 = vst [vmem:[#allocation9 + $0x4] sm:$0xf] %v786
      %803 = vst [vmem:[#allocation9 + $0x8] sm:$0xf] %v787
      %804 = vst [vmem:[#allocation9 + $0xc] sm:$0xf] %v788
      %805 = vst [vmem:[#allocation9 + $0x10] sm:$0xf] %v789
      %806 = vst [vmem:[#allocation9 + $0x14] sm:$0xf] %v790
      %807 = vst [vmem:[#allocation9 + $0x18] sm:$0xf] %v791
      %808 = vst [vmem:[#allocation9 + $0x1c] sm:$0xf] %v792
      %809 = vst [vmem:[#allocation9 + $0x20] sm:$0xf] %v793
      %810 = vst [vmem:[#allocation9 + $0x24] sm:$0xf] %v794
      %811 = vst [vmem:[#allocation9 + $0x28] sm:$0xf] %v795
      %812 = vst [vmem:[#allocation9 + $0x2c] sm:$0xf] %v796
      %813 = vst [vmem:[#allocation9 + $0x30] sm:$0xf] %v797
      %814 = vst [vmem:[#allocation9 + $0x34] sm:$0xf] %v798
      %815 = vst [vmem:[#allocation9 + $0x38] sm:$0xf] %v799
      %816 = vst [vmem:[#allocation9 + $0x3c] sm:$0xf] %v800
    $region37: #{tpu_custom_call.1} parent=1 // pred_fallthru
      _
    // Predicated region
    $region38: #{tpu_custom_call.1} parent=1 // pred_check
      _
    $region39: #{tpu_custom_call.1} parent=1 // pred_check_branch
      %818 = sbr.rel (0) target = $region41
    $region40: #{tpu_custom_call.1} parent=1 // pred_region
      %820 = vsyncadd [#allocation6], 0
      %s821 = sshll.u32 [#allocation9], 4
      %s822 = int_to_ptr.vmem [resolvable:$true] %s821
      %s823 = sshll.u32 %s5, 4
      %s824 = int_to_ptr.hbm [resolvable:$true] %s823
      %829 = dma.vmem_to_hbm [thread:$0]  %s822, 1024, %s824, [#allocation6], 64, 64, 4
    $region41: #{tpu_custom_call.1} parent=1 // pred_fallthru
      _
    // Predicated region
    $region42: #{tpu_custom_call.1} parent=1 // pred_check
      _
    $region43: #{tpu_custom_call.1} parent=1 // pred_check_branch
      %831 = sbr.rel (0) target = $region45
    $region44: #{tpu_custom_call.1} parent=1 // pred_region
      %833 = dma.done [#allocation6], 1024
    $region45: #{tpu_custom_call.1} parent=1 // pred_fallthru
      _
    %834 = vsyncpa [#allocation5], 1
    %835 = vsyncpa [#allocation8], 1
    %836 = vsyncpa [#allocation6], 1

</llo_original>
